<compile_context>
chip_gen: v7x
topology: tpu7x:2x2x1
jax: 0.10.0
libtpu: 0.0.40
codegen_flags: <defaults>
</compile_context>

<pallas_src>
import functools

import jax
import jax.numpy as jnp
from jax.experimental import pallas as pl
from jax.experimental.pallas import tpu as pltpu

_LANES = 128  # lane width; every padded weight tile is 128 lanes wide


def _round_up(n, m):
    return ((n + m - 1) // m) * m


def _actor_critic_kernel(x_ref, slab_ref, mu_ref, var_ref, val_ref, *,
                         num_features, f_pad, w2_off, wh_off, num_actions):
    F = num_features
    A = num_actions

    # Static, 8-row-aligned views into the single packed weight slab
    # (one DMA brought the whole slab in; these are just VMEM loads).
    w1 = slab_ref[0:F, :]                      # [F, 128]
    b1 = slab_ref[f_pad:f_pad + 1, :]          # [1, 128]  bias + carrier 1.0
    w2 = slab_ref[w2_off:w2_off + _LANES, :]   # [128, 128] bias folded (carrier)
    wh = slab_ref[wh_off:wh_off + _LANES, :]   # [128, 128] fused mu|var|critic

    x = x_ref[...]                             # [B, F] raw observations

    # NOTE(invariant): bias folding in w2/wh relies on relu(1) == 1 for the
    # carrier column; it silently breaks if the hidden activation changes.
    h1 = jnp.maximum(
        jnp.dot(x, w1, preferred_element_type=jnp.float32) + b1, 0.0)
    h2 = jnp.maximum(
        jnp.dot(h1, w2, preferred_element_type=jnp.float32), 0.0)
    raw = jnp.dot(h2, wh, preferred_element_type=jnp.float32)   # [B, 128]

    # Heads: cols [0,A) -> mu (tanh), [A,2A) -> var (softplus), col 2A -> value.
    mu_ref[...] = jnp.tanh(raw[:, 0:A])
    v = raw[:, A:2 * A]
    var_ref[...] = jnp.maximum(v, 0.0) + jnp.log1p(jnp.exp(-jnp.abs(v)))  # stable softplus
    val_ref[...] = raw[:, 2 * A:2 * A + 1]


def prepare_params(params):
    """One-time conversion of PyTorch-convention params into a single packed,
    lane-dense weight slab (transposed, biases folded, heads fused)."""
    f32 = lambda a: jnp.asarray(a, jnp.float32)
    W1, b1 = f32(params["fc1_w"]), f32(params["fc1_b"])        # [H, F],  [H]
    W2, b2 = f32(params["fc2_w"]), f32(params["fc2_b"])        # [H2, H], [H2]
    Wm, bm = f32(params["mu_w"]), f32(params["mu_b"])          # [A, H2], [A]
    Wv, bv = f32(params["var_w"]), f32(params["var_b"])        # [A, H2], [A]
    Wc, bc = f32(params["critic_w"]), f32(params["critic_b"])  # [1, H2], [1]

    H, F = W1.shape
    H2 = W2.shape[0]
    A = Wm.shape[0]
    assert H + 1 <= _LANES and H2 + 1 <= _LANES and 2 * A + 1 <= _LANES, (
        "bias-carrier layout assumes each layer width (+carrier) fits 128 lanes")

    f_pad = _round_up(F, 8)          # w1 zone rows (only first F used)
    b1_off = f_pad                   # 8-row bias zone; only row f_pad used
    w2_off = f_pad + 8
    wh_off = w2_off + _LANES
    total = wh_off + _LANES          # multiple of 8

    slab = jnp.zeros((total, _LANES), jnp.float32)
    # layer 1: weight in cols [0,H); bias row with carrier 1.0 at col H.
    slab = slab.at[0:F, 0:H].set(W1.T)
    slab = slab.at[b1_off, 0:H].set(b1).at[b1_off, H].set(1.0)
    # layer 2: weight; bias folded into row H; carrier regenerated at col H2.
    slab = slab.at[w2_off:w2_off + H, 0:H2].set(W2.T)
    slab = slab.at[w2_off + H, 0:H2].set(b2).at[w2_off + H, H2].set(1.0)
    # fused heads: cols [mu(A) | var(A) | critic(1) | zero pad]; biases in row H2.
    slab = slab.at[wh_off:wh_off + H2, 0:A].set(Wm.T)
    slab = slab.at[wh_off:wh_off + H2, A:2 * A].set(Wv.T)
    slab = slab.at[wh_off:wh_off + H2, 2 * A:2 * A + 1].set(Wc.T)
    slab = slab.at[wh_off + H2, 0:A].set(bm)
    slab = slab.at[wh_off + H2, A:2 * A].set(bv)
    slab = slab.at[wh_off + H2, 2 * A].set(bc[0])

    return dict(slab=slab, num_features=F, f_pad=f_pad, w2_off=w2_off,
                wh_off=wh_off, num_actions=A)


@functools.partial(
    jax.jit,
    static_argnames=("num_features", "f_pad", "w2_off", "wh_off", "num_actions"))
def _forward_impl(x, slab, *, num_features, f_pad, w2_off, wh_off, num_actions):
    B = x.shape[0]
    A = num_actions
    x = x.astype(jnp.float32)

    vmem = pl.BlockSpec(memory_space=pltpu.MemorySpace.VMEM)
    flops = 2 * B * (num_features * _LANES + _LANES * _LANES + _LANES * _LANES)
    bytes_accessed = 4 * (x.size + slab.size + B * (2 * A + 1))

    mu, var, value = pl.pallas_call(
        functools.partial(
            _actor_critic_kernel, num_features=num_features, f_pad=f_pad,
            w2_off=w2_off, wh_off=wh_off, num_actions=A),
        out_shape=(jax.ShapeDtypeStruct((B, A), jnp.float32),
                   jax.ShapeDtypeStruct((B, A), jnp.float32),
                   jax.ShapeDtypeStruct((B, 1), jnp.float32)),
        in_specs=[vmem, vmem],
        out_specs=(vmem, vmem, vmem),
        cost_estimate=pl.CostEstimate(
            flops=flops, transcendentals=3 * B * A,
            bytes_accessed=bytes_accessed),
    )(x, slab)
    return mu, var, value


def actor_critic_forward(x, prepped):
    """x: [B, num_features]; prepped: output of prepare_params."""
    return _forward_impl(
        x, prepped["slab"],
        num_features=prepped["num_features"], f_pad=prepped["f_pad"],
        w2_off=prepped["w2_off"], wh_off=prepped["wh_off"],
        num_actions=prepped["num_actions"])


def init_params(key, num_features, num_actions, hidden_size):
    """Deterministic synthetic init (PyTorch nn.Linear shape conventions)."""
    h2 = hidden_size // 2
    ks = jax.random.split(key, 10)

    def lin(kw, kb, out_dim, in_dim):
        w = 0.1 * jax.random.normal(kw, (out_dim, in_dim), jnp.float32)
        b = 0.1 * jax.random.normal(kb, (out_dim,), jnp.float32)
        return w, b

    fc1_w, fc1_b = lin(ks[0], ks[1], hidden_size, num_features)
    fc2_w, fc2_b = lin(ks[2], ks[3], h2, hidden_size)
    mu_w, mu_b = lin(ks[4], ks[5], num_actions, h2)
    var_w, var_b = lin(ks[6], ks[7], num_actions, h2)
    critic_w, critic_b = lin(ks[8], ks[9], 1, h2)

    return dict(
        fc1_w=fc1_w, fc1_b=fc1_b,
        fc2_w=fc2_w, fc2_b=fc2_b,
        mu_w=mu_w, mu_b=mu_b,
        var_w=var_w, var_b=var_b,
        critic_w=critic_w, critic_b=critic_b,
    )


if __name__ == "__main__":
    # MountainCarContinuous-v0: observation dim = 2, action dim = 1.
    num_features = 2
    num_actions = 1
    hidden_size = 32
    batch = 2

    key = jax.random.PRNGKey(0)
    k_x, k_p = jax.random.split(key)
    x = jax.random.normal(k_x, (batch, num_features), jnp.float32)
    params = init_params(k_p, num_features, num_actions, hidden_size)

    # One-time parameter preparation (transpose / bias-fold / head-fuse / pack).
    prepped = prepare_params(params)

    mu, var, value = actor_critic_forward(x, prepped)
    jax.block_until_ready((mu, var, value))

    # Pure-JAX reference of the original PyTorch math.
    h1 = jax.nn.relu(x @ params["fc1_w"].T + params["fc1_b"])
    h2 = jax.nn.relu(h1 @ params["fc2_w"].T + params["fc2_b"])
    mu_ref = jnp.tanh(h2 @ params["mu_w"].T + params["mu_b"])
    var_ref = jax.nn.softplus(h2 @ params["var_w"].T + params["var_b"])
    val_ref = h2 @ params["critic_w"].T + params["critic_b"]

    assert mu.shape == (batch, num_actions)
    assert var.shape == (batch, num_actions)
    assert value.shape == (batch, 1)
    assert jnp.allclose(mu, mu_ref, atol=2e-5)
    assert jnp.allclose(var, var_ref, atol=2e-5)
    assert jnp.allclose(value, val_ref, atol=2e-5)

    print("KERNEL_OK")
</pallas_src>

<mosaic_0001>
module attributes {stable_mosaic.version = 11 : i64} {
  func.func @_actor_critic_kernel(%arg0: memref<2x2xf32, #tpu.memory_space<vmem>>, %arg1: memref<272x128xf32, #tpu.memory_space<vmem>>, %arg2: memref<2x1xf32, #tpu.memory_space<vmem>>, %arg3: memref<2x1xf32, #tpu.memory_space<vmem>>, %arg4: memref<2x1xf32, #tpu.memory_space<vmem>>) attributes {dimension_semantics = [], scalar_prefetch = 0 : i64, scratch_operands = 0 : i64, tpu.core_type = #tpu.core_type<tc>} {
    %c0 = arith.constant 0 : index
    %c0_0 = arith.constant 0 : index
    %0 = vector.load %arg1[%c0, %c0_0] : memref<272x128xf32, #tpu.memory_space<vmem>>, vector<2x128xf32>
    %c8 = arith.constant 8 : index
    %c0_1 = arith.constant 0 : index
    %1 = vector.load %arg1[%c8, %c0_1] : memref<272x128xf32, #tpu.memory_space<vmem>>, vector<1x128xf32>
    %c16 = arith.constant 16 : index
    %c0_2 = arith.constant 0 : index
    %2 = vector.load %arg1[%c16, %c0_2] : memref<272x128xf32, #tpu.memory_space<vmem>>, vector<128x128xf32>
    %c144 = arith.constant 144 : index
    %c0_3 = arith.constant 0 : index
    %3 = vector.load %arg1[%c144, %c0_3] : memref<272x128xf32, #tpu.memory_space<vmem>>, vector<128x128xf32>
    %c0_4 = arith.constant 0 : index
    %c0_5 = arith.constant 0 : index
    %4 = vector.load %arg0[%c0_4, %c0_5] : memref<2x2xf32, #tpu.memory_space<vmem>>, vector<2x2xf32>
    %cst = arith.constant dense<0.000000e+00> : vector<2x128xf32>
    %5 = tpu.matmul %4, %0, %cst {dimension_numbers = #tpu.dot_dimension_numbers<[1], [0], [0], [1], [0, 0, 1, 1], [], []>} : vector<2x2xf32>, vector<2x128xf32>, vector<2x128xf32> -> vector<2x128xf32>
    %6 = vector.broadcast %1 : vector<1x128xf32> to vector<2x128xf32>
    %7 = arith.addf %5, %6 : vector<2x128xf32>
    %cst_6 = arith.constant 0.000000e+00 : f32
    %8 = vector.broadcast %cst_6 : f32 to vector<2x128xf32>
    %9 = arith.maximumf %7, %8 : vector<2x128xf32>
    %cst_7 = arith.constant dense<0.000000e+00> : vector<2x128xf32>
    %10 = tpu.matmul %9, %2, %cst_7 {dimension_numbers = #tpu.dot_dimension_numbers<[1], [0], [0], [1], [0, 0, 1, 1], [], []>} : vector<2x128xf32>, vector<128x128xf32>, vector<2x128xf32> -> vector<2x128xf32>
    %cst_8 = arith.constant 0.000000e+00 : f32
    %11 = vector.broadcast %cst_8 : f32 to vector<2x128xf32>
    %12 = arith.maximumf %10, %11 : vector<2x128xf32>
    %cst_9 = arith.constant dense<0.000000e+00> : vector<2x128xf32>
    %13 = tpu.matmul %12, %3, %cst_9 {dimension_numbers = #tpu.dot_dimension_numbers<[1], [0], [0], [1], [0, 0, 1, 1], [], []>} : vector<2x128xf32>, vector<128x128xf32>, vector<2x128xf32> -> vector<2x128xf32>
    %14 = vector.extract_strided_slice %13 {offsets = [0, 0], sizes = [2, 1], strides = [1, 1]} : vector<2x128xf32> to vector<2x1xf32>
    %15 = math.tanh %14 : vector<2x1xf32>
    %c0_10 = arith.constant 0 : index
    %c0_11 = arith.constant 0 : index
    %16 = vector.load %arg2[%c0_10, %c0_11] : memref<2x1xf32, #tpu.memory_space<vmem>>, vector<2x1xf32>
    tpu.vector_store %arg2[%c0_10, %c0_11], %15 {strides = array<i32>} : memref<2x1xf32, #tpu.memory_space<vmem>>, vector<2x1xf32>,
    %17 = vector.extract_strided_slice %13 {offsets = [0, 1], sizes = [2, 1], strides = [1, 1]} : vector<2x128xf32> to vector<2x1xf32>
    %cst_12 = arith.constant 0.000000e+00 : f32
    %18 = vector.broadcast %cst_12 : f32 to vector<2x1xf32>
    %19 = arith.maximumf %17, %18 : vector<2x1xf32>
    %20 = math.absf %17 : vector<2x1xf32>
    %cst_13 = arith.constant 0.000000e+00 : f32
    %21 = vector.broadcast %cst_13 : f32 to vector<2x1xf32>
    %22 = arith.subf %21, %20 : vector<2x1xf32>
    %23 = math.exp %22 : vector<2x1xf32>
    %24 = math.log1p %23 : vector<2x1xf32>
    %25 = arith.addf %19, %24 : vector<2x1xf32>
    %c0_14 = arith.constant 0 : index
    %c0_15 = arith.constant 0 : index
    %26 = vector.load %arg3[%c0_14, %c0_15] : memref<2x1xf32, #tpu.memory_space<vmem>>, vector<2x1xf32>
    tpu.vector_store %arg3[%c0_14, %c0_15], %25 {strides = array<i32>} : memref<2x1xf32, #tpu.memory_space<vmem>>, vector<2x1xf32>,
    %27 = vector.extract_strided_slice %13 {offsets = [0, 2], sizes = [2, 1], strides = [1, 1]} : vector<2x128xf32> to vector<2x1xf32>
    %c0_16 = arith.constant 0 : index
    %c0_17 = arith.constant 0 : index
    %28 = vector.load %arg4[%c0_16, %c0_17] : memref<2x1xf32, #tpu.memory_space<vmem>>, vector<2x1xf32>
    tpu.vector_store %arg4[%c0_16, %c0_17], %27 {strides = array<i32>} : memref<2x1xf32, #tpu.memory_space<vmem>>, vector<2x1xf32>,
    return
  }
}

</mosaic_0001>

<llo_original>
// kernel: _forward_impl.1
$region0: #{_forward_impl.1}
  #allocation0 [shape = 'u32[]', space=smem, size = 0x4, offset = 0x4, fixed_abs, tag = 'smem constant byte address 0x4 - core index']
  #allocation1 [shape = 'u32[144,128]{1,0:T(1,128)}', space=vmem, size = 0x12000, scoped, tag = 'internal scratch']
  %s0 = inlined_call_operand.hbm [shape: f32[2,2], index: 0, kind: input, shape index: {}]
  %s1 = inlined_call_operand.hbm [shape: f32[272,128], index: 1, kind: input, shape index: {}]
  %s2 = inlined_call_operand.vmem [shape: f32[2,1], index: 2, kind: output, shape index: {0}]
  %s3 = inlined_call_operand.vmem [shape: f32[2,1], index: 3, kind: output, shape index: {1}]
  %s4 = inlined_call_operand.vmem [shape: f32[2,1], index: 4, kind: output, shape index: {2}]
  %5 = xla_tuple %s2, %s3, %s4
  %s6 = sld [smem:[#allocation0]]
  $region42: #{_forward_impl.1} parent=0
    _
  %s8 = ssub.s32 1, %s6
  %s9 = scalar_select 0, %s8, %s6
  $region1: #{_forward_impl.1} parent=0
    #allocation2 [shape = 'u8[1024]{0}', space=vmem, size = 0x400, scoped, tag = 'input window, operand 0, single buffered']
    #allocation3 [shape = 's32[1]{0}', space=sflag, size = 0x4, scoped, tag = 'scoped memory for _forward_impl.1']
    #allocation4 [shape = 'u8[139264]{0}', space=vmem, size = 0x22000, scoped, tag = 'input window, operand 1, single buffered']
    #allocation5 [shape = 's32[1]{0}', space=sflag, size = 0x4, scoped, tag = 'scoped memory for _forward_impl.1']
    %10 = vsyncpa [#allocation3], 0
    %11 = vsyncpa [#allocation5], 0
    // Predicated region
    $region2: #{_forward_impl.1} parent=1 // pred_check
      _
    $region3: #{_forward_impl.1} parent=1 // pred_check_branch
      %13 = sbr.rel (0) target = $region5
    $region4: #{_forward_impl.1} parent=1 // pred_region
      %s15 = ssub.s32 32, 32
      %16 = vsyncadd [#allocation3], %s15
      %s18 = sshll.u32 [#allocation2], 4
      %s19 = int_to_ptr.vmem [resolvable:$true] %s18
      %21 = dma.hbm_to_vmem [thread:$0]  %s0, 32, %s19, [#allocation3]
    $region5: #{_forward_impl.1} parent=1 // pred_fallthru
      _
    // Predicated region
    $region6: #{_forward_impl.1} parent=1 // pred_check
      _
    $region7: #{_forward_impl.1} parent=1 // pred_check_branch
      %23 = sbr.rel (0) target = $region9
    $region8: #{_forward_impl.1} parent=1 // pred_region
      %s25 = ssub.s32 4352, 4352
      %26 = vsyncadd [#allocation5], %s25
      %s27 = sshll.u32 [#allocation4], 4
      %s28 = int_to_ptr.vmem [resolvable:$true] %s27
      %33 = dma.hbm_to_vmem [thread:$0]  %s1, 4352, %s28, [#allocation5], 128, 128, 8
    $region9: #{_forward_impl.1} parent=1 // pred_fallthru
      _
    // Predicated region
    $region10: #{_forward_impl.1} parent=1 // pred_check
      _
    $region11: #{_forward_impl.1} parent=1 // pred_check_branch
      %35 = sbr.rel (0) target = $region13
    $region12: #{_forward_impl.1} parent=1 // pred_region
      %36 = dma.done [#allocation3], 32
    $region13: #{_forward_impl.1} parent=1 // pred_fallthru
      _
    // Predicated region
    $region14: #{_forward_impl.1} parent=1 // pred_check
      _
    $region15: #{_forward_impl.1} parent=1 // pred_check_branch
      %38 = sbr.rel (0) target = $region17
    $region16: #{_forward_impl.1} parent=1 // pred_region
      %39 = dma.done [#allocation5], 4352
    $region17: #{_forward_impl.1} parent=1 // pred_fallthru
      _
    %v40 = vld [vmem:[#allocation4] sm:$0x3]
    %v41 = vld [vmem:[#allocation4 + $0x8] sm:$0x1]
    %v42 = vld [vmem:[#allocation4 + $0x10] sm:$0xff]
    %v43 = vld [vmem:[#allocation4 + $0x18] sm:$0xff]
    %v44 = vld [vmem:[#allocation4 + $0x20] sm:$0xff]
    %v45 = vld [vmem:[#allocation4 + $0x28] sm:$0xff]
    %v46 = vld [vmem:[#allocation4 + $0x30] sm:$0xff]
    %v47 = vld [vmem:[#allocation4 + $0x38] sm:$0xff]
    %v48 = vld [vmem:[#allocation4 + $0x40] sm:$0xff]
    %v49 = vld [vmem:[#allocation4 + $0x48] sm:$0xff]
    %v50 = vld [vmem:[#allocation4 + $0x50] sm:$0xff]
    %v51 = vld [vmem:[#allocation4 + $0x58] sm:$0xff]
    %v52 = vld [vmem:[#allocation4 + $0x60] sm:$0xff]
    %v53 = vld [vmem:[#allocation4 + $0x68] sm:$0xff]
    %v54 = vld [vmem:[#allocation4 + $0x70] sm:$0xff]
    %v55 = vld [vmem:[#allocation4 + $0x78] sm:$0xff]
    %v56 = vld [vmem:[#allocation4 + $0x80] sm:$0xff]
    %v57 = vld [vmem:[#allocation4 + $0x88] sm:$0xff]
    %v58 = vld [vmem:[#allocation4 + $0x90] sm:$0xff]
    %v59 = vld [vmem:[#allocation4 + $0x98] sm:$0xff]
    %v60 = vld [vmem:[#allocation4 + $0xa0] sm:$0xff]
    %v61 = vld [vmem:[#allocation4 + $0xa8] sm:$0xff]
    %v62 = vld [vmem:[#allocation4 + $0xb0] sm:$0xff]
    %v63 = vld [vmem:[#allocation4 + $0xb8] sm:$0xff]
    %v64 = vld [vmem:[#allocation4 + $0xc0] sm:$0xff]
    %v65 = vld [vmem:[#allocation4 + $0xc8] sm:$0xff]
    %v66 = vld [vmem:[#allocation4 + $0xd0] sm:$0xff]
    %v67 = vld [vmem:[#allocation4 + $0xd8] sm:$0xff]
    %v68 = vld [vmem:[#allocation4 + $0xe0] sm:$0xff]
    %v69 = vld [vmem:[#allocation4 + $0xe8] sm:$0xff]
    %v70 = vld [vmem:[#allocation4 + $0xf0] sm:$0xff]
    %v71 = vld [vmem:[#allocation4 + $0xf8] sm:$0xff]
    %v72 = vld [vmem:[#allocation4 + $0x100] sm:$0xff]
    %v73 = vld [vmem:[#allocation4 + $0x108] sm:$0xff]
    %v74 = vld [vmem:[#allocation2] sm:$0x3]
    %v75 = vlaneseq
    %v76 = vshrl.u32 %v75, 7
    %v77 = vsub.s32 0, %v76
    %v78 = vrot.slane %v41, %v77
    %vm79 = vcmask 15360
    %v81 = vsel %vm79, %v74, 0
    %vm83 = vcmask 1041408
    %v85 = vsel %vm83, %v40, 0
    %87 = vmatprep.subr.mxu0 0.0
    %88 = vmatpush1.msra.mxu0 %v85
    %89 = vmatprep.subr.mxu0 0.0
    %90 = vmatpush1.msra.mxu0 0.0
    %91 = vmatprep.subr.mxu0 0.0
    %92 = vmatpush1.msra.mxu0 0.0
    %93 = vmatprep.subr.mxu0 0.0
    %94 = vmatpush1.msra.mxu0 0.0
    %95 = vmatprep.subr.mxu0 0.0
    %96 = vmatpush1.msra.mxu0 0.0
    %97 = vmatprep.subr.mxu0 0.0
    %98 = vmatpush1.msra.mxu0 0.0
    %99 = vmatprep.subr.mxu0 0.0
    %100 = vmatpush1.msra.mxu0 0.0
    %101 = vmatprep.subr.mxu0 0.0
    %102 = vmatpush1.msra.mxu0 0.0
    %103 = vmatprep.subr.mxu0 0.0
    %104 = vmatpush1.msra.mxu0 0.0
    %105 = vmatprep.subr.mxu0 0.0
    %106 = vmatpush1.msra.mxu0 0.0
    %107 = vmatprep.subr.mxu0 0.0
    %108 = vmatpush1.msra.mxu0 0.0
    %109 = vmatprep.subr.mxu0 0.0
    %110 = vmatpush1.msra.mxu0 0.0
    %111 = vmatprep.subr.mxu0 0.0
    %112 = vmatpush1.msra.mxu0 0.0
    %113 = vmatprep.subr.mxu0 0.0
    %114 = vmatpush1.msra.mxu0 0.0
    %115 = vmatprep.subr.mxu0 0.0
    %116 = vmatpush1.msra.mxu0 0.0
    %117 = vmatprep.subr.mxu0 0.0
    %118 = vmatpush1.msra.mxu0 0.0
    %119 = vmatprep.subr.mxu0 0.0
    %120 = vmatpush1.msra.mxu0 0.0
    %121 = vmatprep.subr.mxu0 0.0
    %122 = vmatpush1.msra.mxu0 0.0
    %123 = vmatprep.subr.mxu0 0.0
    %124 = vmatpush1.msra.mxu0 0.0
    %125 = vmatprep.subr.mxu0 0.0
    %126 = vmatpush1.msra.mxu0 0.0
    %127 = vmatprep.subr.mxu0 0.0
    %128 = vmatpush1.msra.mxu0 0.0
    %129 = vmatprep.subr.mxu0 0.0
    %130 = vmatpush1.msra.mxu0 0.0
    %131 = vmatprep.subr.mxu0 0.0
    %132 = vmatpush1.msra.mxu0 0.0
    %133 = vmatprep.subr.mxu0 0.0
    %134 = vmatpush1.msra.mxu0 0.0
    %135 = vmatprep.subr.mxu0 0.0
    %136 = vmatpush1.msra.mxu0 0.0
    %137 = vmatprep.subr.mxu0 0.0
    %138 = vmatpush1.msra.mxu0 0.0
    %139 = vmatprep.subr.mxu0 0.0
    %140 = vmatpush1.msra.mxu0 0.0
    %141 = vmatprep.subr.mxu0 0.0
    %142 = vmatpush1.msra.mxu0 0.0
    %143 = vmatprep.subr.mxu0 0.0
    %144 = vmatpush1.msra.mxu0 0.0
    %145 = vmatprep.subr.mxu0 0.0
    %146 = vmatpush1.msra.mxu0 0.0
    %147 = vmatprep.subr.mxu0 0.0
    %148 = vmatpush1.msra.mxu0 0.0
    %149 = vmatprep.subr.mxu0 0.0
    %150 = vmatpush1.msra.mxu0 0.0
    %151 = vmatprep.mubr.f32.mxu0 0.0
    %152 = vmatmul.mubr.f32.gmra.mrb[0].mxu0 %v81
    %v153 = vpop.f32.mrb[0].mxu0
    %v154 = vadd.f32 %v78, %v153
    %v155 = vpop.f32.mrb[0].mxu0
    %156 = vdwg.mxu0
    %v157 = vmax.f32 %v154, 0.0
    %158 = vmatprep.subr.mxu0 0.0
    %159 = vmatpush1.msra.mxu0 %v42
    %160 = vmatprep.subr.mxu0 0.0
    %161 = vmatpush1.msra.mxu0 %v43
    %162 = vmatprep.subr.mxu0 0.0
    %163 = vmatpush1.msra.mxu0 %v44
    %164 = vmatprep.subr.mxu0 0.0
    %165 = vmatpush1.msra.mxu0 %v45
    %166 = vmatprep.subr.mxu0 0.0
    %167 = vmatpush1.msra.mxu0 %v46
    %168 = vmatprep.subr.mxu0 0.0
    %169 = vmatpush1.msra.mxu0 %v47
    %170 = vmatprep.subr.mxu0 0.0
    %171 = vmatpush1.msra.mxu0 %v48
    %172 = vmatprep.subr.mxu0 0.0
    %173 = vmatpush1.msra.mxu0 %v49
    %174 = vmatprep.subr.mxu0 0.0
    %175 = vmatpush1.msra.mxu0 %v50
    %176 = vmatprep.subr.mxu0 0.0
    %177 = vmatpush1.msra.mxu0 %v51
    %178 = vmatprep.subr.mxu0 0.0
    %179 = vmatpush1.msra.mxu0 %v52
    %180 = vmatprep.subr.mxu0 0.0
    %181 = vmatpush1.msra.mxu0 %v53
    %182 = vmatprep.subr.mxu0 0.0
    %183 = vmatpush1.msra.mxu0 %v54
    %184 = vmatprep.subr.mxu0 0.0
    %185 = vmatpush1.msra.mxu0 %v55
    %186 = vmatprep.subr.mxu0 0.0
    %187 = vmatpush1.msra.mxu0 %v56
    %188 = vmatprep.subr.mxu0 0.0
    %189 = vmatpush1.msra.mxu0 %v57
    %190 = vmatprep.subr.mxu0 0.0
    %191 = vmatpush1.msra.mxu0 0.0
    %192 = vmatprep.subr.mxu0 0.0
    %193 = vmatpush1.msra.mxu0 0.0
    %194 = vmatprep.subr.mxu0 0.0
    %195 = vmatpush1.msra.mxu0 0.0
    %196 = vmatprep.subr.mxu0 0.0
    %197 = vmatpush1.msra.mxu0 0.0
    %198 = vmatprep.subr.mxu0 0.0
    %199 = vmatpush1.msra.mxu0 0.0
    %200 = vmatprep.subr.mxu0 0.0
    %201 = vmatpush1.msra.mxu0 0.0
    %202 = vmatprep.subr.mxu0 0.0
    %203 = vmatpush1.msra.mxu0 0.0
    %204 = vmatprep.subr.mxu0 0.0
    %205 = vmatpush1.msra.mxu0 0.0
    %206 = vmatprep.subr.mxu0 0.0
    %207 = vmatpush1.msra.mxu0 0.0
    %208 = vmatprep.subr.mxu0 0.0
    %209 = vmatpush1.msra.mxu0 0.0
    %210 = vmatprep.subr.mxu0 0.0
    %211 = vmatpush1.msra.mxu0 0.0
    %212 = vmatprep.subr.mxu0 0.0
    %213 = vmatpush1.msra.mxu0 0.0
    %214 = vmatprep.subr.mxu0 0.0
    %215 = vmatpush1.msra.mxu0 0.0
    %216 = vmatprep.subr.mxu0 0.0
    %217 = vmatpush1.msra.mxu0 0.0
    %218 = vmatprep.subr.mxu0 0.0
    %219 = vmatpush1.msra.mxu0 0.0
    %220 = vmatprep.subr.mxu0 0.0
    %221 = vmatpush1.msra.mxu0 0.0
    %222 = vmatprep.mubr.f32.mxu0 0.0
    %223 = vmatmul.mubr.f32.gmra.mrb[0].mxu0 %v157
    %v224 = vpop.f32.mrb[0].mxu0
    %v225 = vadd.f32 0.0, %v224
    %v226 = vpop.f32.mrb[0].mxu0
    %227 = vdwg.mxu0
    %v228 = vmax.f32 %v225, 0.0
    %229 = vmatprep.subr.mxu0 0.0
    %230 = vmatpush1.msra.mxu0 %v58
    %231 = vmatprep.subr.mxu0 0.0
    %232 = vmatpush1.msra.mxu0 %v59
    %233 = vmatprep.subr.mxu0 0.0
    %234 = vmatpush1.msra.mxu0 %v60
    %235 = vmatprep.subr.mxu0 0.0
    %236 = vmatpush1.msra.mxu0 %v61
    %237 = vmatprep.subr.mxu0 0.0
    %238 = vmatpush1.msra.mxu0 %v62
    %239 = vmatprep.subr.mxu0 0.0
    %240 = vmatpush1.msra.mxu0 %v63
    %241 = vmatprep.subr.mxu0 0.0
    %242 = vmatpush1.msra.mxu0 %v64
    %243 = vmatprep.subr.mxu0 0.0
    %244 = vmatpush1.msra.mxu0 %v65
    %245 = vmatprep.subr.mxu0 0.0
    %246 = vmatpush1.msra.mxu0 %v66
    %247 = vmatprep.subr.mxu0 0.0
    %248 = vmatpush1.msra.mxu0 %v67
    %249 = vmatprep.subr.mxu0 0.0
    %250 = vmatpush1.msra.mxu0 %v68
    %251 = vmatprep.subr.mxu0 0.0
    %252 = vmatpush1.msra.mxu0 %v69
    %253 = vmatprep.subr.mxu0 0.0
    %254 = vmatpush1.msra.mxu0 %v70
    %255 = vmatprep.subr.mxu0 0.0
    %256 = vmatpush1.msra.mxu0 %v71
    %257 = vmatprep.subr.mxu0 0.0
    %258 = vmatpush1.msra.mxu0 %v72
    %259 = vmatprep.subr.mxu0 0.0
    %260 = vmatpush1.msra.mxu0 %v73
    %261 = vmatprep.subr.mxu0 0.0
    %262 = vmatpush1.msra.mxu0 0.0
    %263 = vmatprep.subr.mxu0 0.0
    %264 = vmatpush1.msra.mxu0 0.0
    %265 = vmatprep.subr.mxu0 0.0
    %266 = vmatpush1.msra.mxu0 0.0
    %267 = vmatprep.subr.mxu0 0.0
    %268 = vmatpush1.msra.mxu0 0.0
    %269 = vmatprep.subr.mxu0 0.0
    %270 = vmatpush1.msra.mxu0 0.0
    %271 = vmatprep.subr.mxu0 0.0
    %272 = vmatpush1.msra.mxu0 0.0
    %273 = vmatprep.subr.mxu0 0.0
    %274 = vmatpush1.msra.mxu0 0.0
    %275 = vmatprep.subr.mxu0 0.0
    %276 = vmatpush1.msra.mxu0 0.0
    %277 = vmatprep.subr.mxu0 0.0
    %278 = vmatpush1.msra.mxu0 0.0
    %279 = vmatprep.subr.mxu0 0.0
    %280 = vmatpush1.msra.mxu0 0.0
    %281 = vmatprep.subr.mxu0 0.0
    %282 = vmatpush1.msra.mxu0 0.0
    %283 = vmatprep.subr.mxu0 0.0
    %284 = vmatpush1.msra.mxu0 0.0
    %285 = vmatprep.subr.mxu0 0.0
    %286 = vmatpush1.msra.mxu0 0.0
    %287 = vmatprep.subr.mxu0 0.0
    %288 = vmatpush1.msra.mxu0 0.0
    %289 = vmatprep.subr.mxu0 0.0
    %290 = vmatpush1.msra.mxu0 0.0
    %291 = vmatprep.subr.mxu0 0.0
    %292 = vmatpush1.msra.mxu0 0.0
    %293 = vmatprep.mubr.f32.mxu0 0.0
    %294 = vmatmul.mubr.f32.gmra.mrb[0].mxu0 %v228
    %v295 = vpop.f32.mrb[0].mxu0
    %v296 = vadd.f32 0.0, %v295
    %v297 = vpop.f32.mrb[0].mxu0
    %298 = vdwg.mxu0
    %v299 = vtanh.pop %v296
    %vm300 = vcmask 1024
    %301 = vst.msk [vmem:[%s2] sm:$0x3] %vm300, %v299
    %v302 = vmax.f32 %v296, 0.0
    %v303 = vand.u32 2147483647, %v296
    %v304 = vsub.f32 0.0, %v303
    %v305 = vmul.f32 %v304, 1.442695
    %v306 = vpow.pop %v305
    %v307 = vadd.f32 %v306, 1.0
    %v308 = vlog2.pop %v307
    %v309 = vmul.f32 %v308, 0.6931472
    %v310 = vmul.f32 -0.5, %v306
    %v311 = vadd.f32 %v310, 1.0
    %v312 = vmul.f32 %v311, %v306
    %v313 = vand.u32 2147483647, %v306
    %vm314 = vcmp.lt.f32.partialorder %v313, 0.0004427343
    %v315 = vsel %vm314, %v312, %v309
    %v316 = vadd.f32 %v302, %v315
    %318 = vrot.lane.b32.xlu0 %v316, 127
    %v319 = vpop.permute.xlu0 %318
    %321 = vst.msk [vmem:[%s3] sm:$0x3] %vm300, %v319
    %323 = vrot.lane.b32.xlu0 %v296, 126
    %v324 = vpop.permute.xlu0 %323
    %326 = vst.msk [vmem:[%s4] sm:$0x3] %vm300, %v324
    // Predicated region
    $region18: #{_forward_impl.1} parent=1 // pred_check
      _
    $region19: #{_forward_impl.1} parent=1 // pred_check_branch
      %328 = sbr.rel (0) target = $region21
    $region20: #{_forward_impl.1} parent=1 // pred_region
      _
    $region21: #{_forward_impl.1} parent=1 // pred_fallthru
      _
    // Predicated region
    $region22: #{_forward_impl.1} parent=1 // pred_check
      _
    $region23: #{_forward_impl.1} parent=1 // pred_check_branch
      %330 = sbr.rel (0) target = $region25
    $region24: #{_forward_impl.1} parent=1 // pred_region
      _
    $region25: #{_forward_impl.1} parent=1 // pred_fallthru
      _
    // Predicated region
    $region26: #{_forward_impl.1} parent=1 // pred_check
      _
    $region27: #{_forward_impl.1} parent=1 // pred_check_branch
      %332 = sbr.rel (0) target = $region29
    $region28: #{_forward_impl.1} parent=1 // pred_region
      _
    $region29: #{_forward_impl.1} parent=1 // pred_fallthru
      _
    // Predicated region
    $region30: #{_forward_impl.1} parent=1 // pred_check
      _
    $region31: #{_forward_impl.1} parent=1 // pred_check_branch
      %334 = sbr.rel (0) target = $region33
    $region32: #{_forward_impl.1} parent=1 // pred_region
      _
    $region33: #{_forward_impl.1} parent=1 // pred_fallthru
      _
    // Predicated region
    $region34: #{_forward_impl.1} parent=1 // pred_check
      _
    $region35: #{_forward_impl.1} parent=1 // pred_check_branch
      %336 = sbr.rel (0) target = $region37
    $region36: #{_forward_impl.1} parent=1 // pred_region
      _
    $region37: #{_forward_impl.1} parent=1 // pred_fallthru
      _
    // Predicated region
    $region38: #{_forward_impl.1} parent=1 // pred_check
      _
    $region39: #{_forward_impl.1} parent=1 // pred_check_branch
      %338 = sbr.rel (0) target = $region41
    $region40: #{_forward_impl.1} parent=1 // pred_region
      _
    $region41: #{_forward_impl.1} parent=1 // pred_fallthru
      _
    %339 = vsyncpa [#allocation3], 1
    %340 = vsyncpa [#allocation5], 1

</llo_original>
